<compile_context>
chip_gen: v5e
topology: v5e:2x2
jax: 0.10.0
libtpu: 0.0.40
codegen_flags: <defaults>
</compile_context>

<pallas_src>
import functools

import jax
import jax.numpy as jnp
from jax.experimental import pallas as pl
from jax.experimental.pallas import tpu as pltpu

STATE, HIDDEN, ACTIONS = 8, 64, 4
_B_ROWS = 2 * HIDDEN + 2 * ACTIONS   # 136 = [b1(64) | b2(64) | b3(4) | pad(4)]


def _cdiv(a, b):
    return -(-a // b)


def _round_up(n, m):
    return _cdiv(n, m) * m


def _choose_tile(batch, block_batch):
    """Pick the batch tile (multiple of 128).

    Large tiles amortize the ~0.35us fixed per-grid-step overhead; we also
    force >= 2 grid steps when the batch is splittable so v7x's 2 TensorCores
    share the work, and balance the tile so padding waste stays small.
    """
    b128 = _round_up(max(batch, 1), 128)
    tb_max = min(_round_up(block_batch, 128), b128)
    n_tiles = _cdiv(b128, tb_max)
    if b128 > 128:
        n_tiles = max(n_tiles, 2)          # v7x megacore: keep both TCs busy
    return _round_up(_cdiv(b128, n_tiles), 128)


def qnet_kernel(xt_ref, w1t_ref, w2t_ref, w3t_ref, b_ref, ot_ref):
    """One batch tile: out^T = W3ᵀ @ relu(W2ᵀ @ relu(W1ᵀ @ xᵀ + b1) + b2) + b3."""
    cdt = w2t_ref.dtype                                 # MXU input dtype (f32/bf16)
    xt = xt_ref[...]                                    # (8, TB), batch on lanes
    b1 = b_ref[0:HIDDEN, :]                             # (64, 1) static views
    b2 = b_ref[HIDDEN:2 * HIDDEN, :]                    # (64, 1)
    b3 = b_ref[2 * HIDDEN:2 * HIDDEN + ACTIONS, :]      # (4, 1)

    h1 = jnp.dot(w1t_ref[...], xt, preferred_element_type=jnp.float32) + b1
    h1 = jnp.maximum(h1, 0.0).astype(cdt)               # bias/ReLU stay f32 on VPU
    h2 = jnp.dot(w2t_ref[...], h1, preferred_element_type=jnp.float32) + b2
    h2 = jnp.maximum(h2, 0.0).astype(cdt)
    out = jnp.dot(w3t_ref[...], h2, preferred_element_type=jnp.float32) + b3
    ot_ref[...] = out.astype(ot_ref.dtype)              # (4, TB) lane-dense store


def pack_params(w1, b1, w2, b2, w3, b3, compute_dtype=jnp.float32):
    """One-time parameter plumbing, hoisted out of the forward path.

    Returns (W1^T, W2^T, W3^T, packed biases). Use compute_dtype=jnp.bfloat16
    on v6e/v7x to halve weight/activation DMA bytes (accumulation stays f32).
    """
    w1t = jnp.asarray(w1, jnp.float32).T.astype(compute_dtype)   # (64, 8)
    w2t = jnp.asarray(w2, jnp.float32).T.astype(compute_dtype)   # (64, 64)
    w3t = jnp.asarray(w3, jnp.float32).T.astype(compute_dtype)   # (4, 64)
    pad = jnp.zeros((_B_ROWS - 2 * HIDDEN - ACTIONS,), jnp.float32)
    b_all = jnp.concatenate(
        [jnp.asarray(b1, jnp.float32).reshape(-1),
         jnp.asarray(b2, jnp.float32).reshape(-1),
         jnp.asarray(b3, jnp.float32).reshape(-1), pad]).reshape(_B_ROWS, 1)
    return w1t, w2t, w3t, b_all


@functools.partial(jax.jit, static_argnames=("block_batch",))
def qnetwork_forward_t(xt, params, block_batch=8192):
    """Feature-major forward: xt (8, batch) -> (4, batch). No relayout of x."""
    w1t, w2t, w3t, b_all = params
    batch = xt.shape[1]
    tb = _choose_tile(batch, block_batch)
    bp = _round_up(batch, tb)
    grid = (bp // tb,)

    xt = xt.astype(w1t.dtype)                  # no-op for f32 / pre-cast callers
    if bp != batch:                            # pad only when not tile-aligned
        xt = jnp.pad(xt, ((0, 0), (0, bp - batch)))

    pinned = lambda i: (0, 0)                  # constant index -> VMEM-resident
    itemsize = jnp.dtype(w1t.dtype).itemsize

    out_t = pl.pallas_call(
        qnet_kernel,
        out_shape=jax.ShapeDtypeStruct((ACTIONS, bp), jnp.float32),
        grid=grid,
        in_specs=[
            pl.BlockSpec((STATE, tb), lambda i: (0, i)),   # x^T batch tiles
            pl.BlockSpec((HIDDEN, STATE), pinned),         # W1^T
            pl.BlockSpec((HIDDEN, HIDDEN), pinned),        # W2^T
            pl.BlockSpec((ACTIONS, HIDDEN), pinned),       # W3^T
            pl.BlockSpec((_B_ROWS, 1), pinned),            # packed biases
        ],
        out_specs=pl.BlockSpec((ACTIONS, tb), lambda i: (0, i)),
        compiler_params=pltpu.CompilerParams(
            dimension_semantics=("parallel",),             # v7x megacore
            vmem_limit_bytes=32 * 1024 * 1024),            # lift v5e 16MiB default
        cost_estimate=pl.CostEstimate(
            flops=2 * bp * (STATE * HIDDEN + HIDDEN * HIDDEN + HIDDEN * ACTIONS),
            transcendentals=0,
            bytes_accessed=(itemsize * (STATE * bp + HIDDEN * STATE
                                        + HIDDEN * HIDDEN + ACTIONS * HIDDEN)
                            + 4 * (ACTIONS * bp + _B_ROWS)),
        ),
    )(xt, w1t, w2t, w3t, b_all)

    return out_t[:, :batch] if bp != batch else out_t


@functools.partial(jax.jit, static_argnames=("block_batch",))
def qnetwork_forward(x, params, block_batch=8192):
    """Batch-major convenience wrapper: x (batch, 8) -> (batch, 4).

    Prefer qnetwork_forward_t with feature-major data end-to-end to avoid the
    HBM transpose pass this wrapper adds.
    """
    return qnetwork_forward_t(x.T, params, block_batch=block_batch).T


def init_linear_params(key, fan_in, fan_out):
    # PyTorch nn.Linear default init: U(-1/sqrt(fan_in), 1/sqrt(fan_in))
    kw, kb = jax.random.split(key)
    bound = 1.0 / (fan_in ** 0.5)
    w = jax.random.uniform(kw, (fan_in, fan_out), jnp.float32, -bound, bound)
    b = jax.random.uniform(kb, (fan_out,), jnp.float32, -bound, bound)
    return w, b


def reference_forward(x, w1, b1, w2, b2, w3, b3):
    h = jnp.maximum(x @ w1 + b1, 0.0)
    h = jnp.maximum(h @ w2 + b2, 0.0)
    return h @ w3 + b3


if __name__ == "__main__":
    key = jax.random.PRNGKey(0)
    kx, k1, k2, k3 = jax.random.split(key, 4)

    w1, b1 = init_linear_params(k1, STATE, HIDDEN)     # input:   Linear(8, 64)
    w2, b2 = init_linear_params(k2, HIDDEN, HIDDEN)    # hidden1: Linear(64, 64)
    w3, b3 = init_linear_params(k3, HIDDEN, ACTIONS)   # output:  Linear(64, 4)
    params_f32 = pack_params(w1, b1, w2, b2, w3, b3)

    # 1) small batch, batch-major convenience path, f32 (tight tolerance)
    batch = 8
    x = jax.random.normal(kx, (batch, STATE), jnp.float32)
    out = jax.block_until_ready(qnetwork_forward(x, params_f32))
    ref = reference_forward(x, w1, b1, w2, b2, w3, b3)
    assert out.shape == (batch, ACTIONS)
    assert jnp.allclose(out, ref, atol=1e-5, rtol=1e-5)

    # 2) feature-major path, multi-tile grid + padded tail, f32
    batch2 = 300
    x2 = jax.random.normal(kx, (batch2, STATE), jnp.float32)
    out2 = jax.block_until_ready(
        qnetwork_forward_t(x2.T, params_f32, block_batch=256))
    ref2 = reference_forward(x2, w1, b1, w2, b2, w3, b3)
    assert out2.shape == (ACTIONS, batch2)
    assert jnp.allclose(out2.T, ref2, atol=1e-5, rtol=1e-5)

    # 3) bf16 MXU-input path (v6e/v7x bandwidth optimization; f32 accumulate)
    params_bf16 = pack_params(w1, b1, w2, b2, w3, b3,
                              compute_dtype=jnp.bfloat16)
    out3 = jax.block_until_ready(qnetwork_forward(x2, params_bf16))
    assert out3.shape == (batch2, ACTIONS)
    assert jnp.allclose(out3, ref2, atol=5e-2, rtol=5e-2)

    print("KERNEL_OK")
</pallas_src>

<mosaic_0001>
module attributes {stable_mosaic.version = 11 : i64} {
  func.func @qnet_kernel(%arg0: i32, %arg1: memref<8x128xf32, #tpu.memory_space<vmem>>, %arg2: memref<64x8xf32, #tpu.memory_space<vmem>>, %arg3: memref<64x64xf32, #tpu.memory_space<vmem>>, %arg4: memref<4x64xf32, #tpu.memory_space<vmem>>, %arg5: memref<136x1xf32, #tpu.memory_space<vmem>>, %arg6: memref<4x128xf32, #tpu.memory_space<vmem>>) attributes {dimension_semantics = [#tpu.dimension_semantics<parallel>], iteration_bounds = array<i64: 1>, scalar_prefetch = 0 : i64, scratch_operands = 0 : i64, tpu.core_type = #tpu.core_type<tc>, window_params = [{transform_indices = @transform_0, window_bounds = array<i64: 8, 128>}, {pipeline_mode = #tpu.pipeline_mode<synchronous>, transform_indices = @transform_1, window_bounds = array<i64: 64, 8>}, {pipeline_mode = #tpu.pipeline_mode<synchronous>, transform_indices = @transform_2, window_bounds = array<i64: 64, 64>}, {pipeline_mode = #tpu.pipeline_mode<synchronous>, transform_indices = @transform_3, window_bounds = array<i64: 4, 64>}, {pipeline_mode = #tpu.pipeline_mode<synchronous>, transform_indices = @transform_4, window_bounds = array<i64: 136, 1>}, {transform_indices = @transform_5, window_bounds = array<i64: 4, 128>}]} {
    %c0 = arith.constant 0 : index
    %c0_0 = arith.constant 0 : index
    %0 = vector.load %arg1[%c0, %c0_0] : memref<8x128xf32, #tpu.memory_space<vmem>>, vector<8x128xf32>
    %c0_1 = arith.constant 0 : index
    %c0_2 = arith.constant 0 : index
    %1 = vector.load %arg5[%c0_1, %c0_2] : memref<136x1xf32, #tpu.memory_space<vmem>>, vector<64x1xf32>
    %c64 = arith.constant 64 : index
    %c0_3 = arith.constant 0 : index
    %2 = vector.load %arg5[%c64, %c0_3] : memref<136x1xf32, #tpu.memory_space<vmem>>, vector<64x1xf32>
    %c128 = arith.constant 128 : index
    %c0_4 = arith.constant 0 : index
    %3 = vector.load %arg5[%c128, %c0_4] : memref<136x1xf32, #tpu.memory_space<vmem>>, vector<4x1xf32>
    %c0_5 = arith.constant 0 : index
    %c0_6 = arith.constant 0 : index
    %4 = vector.load %arg2[%c0_5, %c0_6] : memref<64x8xf32, #tpu.memory_space<vmem>>, vector<64x8xf32>
    %cst = arith.constant dense<0.000000e+00> : vector<64x128xf32>
    %5 = tpu.matmul %4, %0, %cst {dimension_numbers = #tpu.dot_dimension_numbers<[1], [0], [0], [1], [0, 0, 1, 1], [], []>} : vector<64x8xf32>, vector<8x128xf32>, vector<64x128xf32> -> vector<64x128xf32>
    %6 = vector.broadcast %1 : vector<64x1xf32> to vector<64x128xf32>
    %7 = arith.addf %5, %6 : vector<64x128xf32>
    %cst_7 = arith.constant 0.000000e+00 : f32
    %8 = vector.broadcast %cst_7 : f32 to vector<64x128xf32>
    %9 = arith.maximumf %7, %8 : vector<64x128xf32>
    %c0_8 = arith.constant 0 : index
    %c0_9 = arith.constant 0 : index
    %10 = vector.load %arg3[%c0_8, %c0_9] : memref<64x64xf32, #tpu.memory_space<vmem>>, vector<64x64xf32>
    %cst_10 = arith.constant dense<0.000000e+00> : vector<64x128xf32>
    %11 = tpu.matmul %10, %9, %cst_10 {dimension_numbers = #tpu.dot_dimension_numbers<[1], [0], [0], [1], [0, 0, 1, 1], [], []>} : vector<64x64xf32>, vector<64x128xf32>, vector<64x128xf32> -> vector<64x128xf32>
    %12 = vector.broadcast %2 : vector<64x1xf32> to vector<64x128xf32>
    %13 = arith.addf %11, %12 : vector<64x128xf32>
    %cst_11 = arith.constant 0.000000e+00 : f32
    %14 = vector.broadcast %cst_11 : f32 to vector<64x128xf32>
    %15 = arith.maximumf %13, %14 : vector<64x128xf32>
    %c0_12 = arith.constant 0 : index
    %c0_13 = arith.constant 0 : index
    %16 = vector.load %arg4[%c0_12, %c0_13] : memref<4x64xf32, #tpu.memory_space<vmem>>, vector<4x64xf32>
    %cst_14 = arith.constant dense<0.000000e+00> : vector<4x128xf32>
    %17 = tpu.matmul %16, %15, %cst_14 {dimension_numbers = #tpu.dot_dimension_numbers<[1], [0], [0], [1], [0, 0, 1, 1], [], []>} : vector<4x64xf32>, vector<64x128xf32>, vector<4x128xf32> -> vector<4x128xf32>
    %18 = vector.broadcast %3 : vector<4x1xf32> to vector<4x128xf32>
    %19 = arith.addf %17, %18 : vector<4x128xf32>
    %c0_15 = arith.constant 0 : index
    %c0_16 = arith.constant 0 : index
    %20 = vector.load %arg6[%c0_15, %c0_16] : memref<4x128xf32, #tpu.memory_space<vmem>>, vector<4x128xf32>
    tpu.vector_store %arg6[%c0_15, %c0_16], %19 {strides = array<i32>} : memref<4x128xf32, #tpu.memory_space<vmem>>, vector<4x128xf32>,
    return
  }
  func.func @transform_0(%arg0: i32) -> (i32, i32) {
    %c0_i32 = arith.constant 0 : i32
    %c0_i32_0 = arith.constant 0 : i32
    return %c0_i32, %arg0 : i32, i32
  }
  func.func @transform_1(%arg0: i32) -> (i32, i32) {
    %c0_i32 = arith.constant 0 : i32
    %c0_i32_0 = arith.constant 0 : i32
    %c0_i32_1 = arith.constant 0 : i32
    return %c0_i32, %c0_i32_0 : i32, i32
  }
  func.func @transform_2(%arg0: i32) -> (i32, i32) {
    %c0_i32 = arith.constant 0 : i32
    %c0_i32_0 = arith.constant 0 : i32
    %c0_i32_1 = arith.constant 0 : i32
    return %c0_i32, %c0_i32_0 : i32, i32
  }
  func.func @transform_3(%arg0: i32) -> (i32, i32) {
    %c0_i32 = arith.constant 0 : i32
    %c0_i32_0 = arith.constant 0 : i32
    %c0_i32_1 = arith.constant 0 : i32
    return %c0_i32, %c0_i32_0 : i32, i32
  }
  func.func @transform_4(%arg0: i32) -> (i32, i32) {
    %c0_i32 = arith.constant 0 : i32
    %c0_i32_0 = arith.constant 0 : i32
    %c0_i32_1 = arith.constant 0 : i32
    return %c0_i32, %c0_i32_0 : i32, i32
  }
  func.func @transform_5(%arg0: i32) -> (i32, i32) {
    %c0_i32 = arith.constant 0 : i32
    %c0_i32_0 = arith.constant 0 : i32
    return %c0_i32, %arg0 : i32, i32
  }
}

</mosaic_0001>

<llo_original>
// kernel: qnetwork_forward_t.1
$region0: #{qnetwork_forward_t.1}
  #allocation0 [shape = 'u32[]', space=smem, size = 0x4, offset = 0x4, fixed_abs, tag = 'smem constant byte address 0x4 - core index']
  #allocation1 [shape = 'u32[72,128]{1,0:T(1,128)}', space=vmem, size = 0x9000, scoped, tag = 'internal scratch']
  %s0 = inlined_call_operand.vmem [shape: f32[8,128], index: 0, kind: input, shape index: {}]
  %s1 = inlined_call_operand.vmem [shape: f32[64,8], index: 1, kind: input, shape index: {}]
  %s2 = inlined_call_operand.vmem [shape: f32[64,64], index: 2, kind: input, shape index: {}]
  %s3 = inlined_call_operand.vmem [shape: f32[4,64], index: 3, kind: input, shape index: {}]
  %s4 = inlined_call_operand.vmem [shape: f32[136,1], index: 4, kind: input, shape index: {}]
  %s5 = inlined_call_operand.hbm [shape: f32[4,128], index: 5, kind: output, shape index: {}]
  %s6 = sld [smem:[#allocation0]]
  $region30: #{qnetwork_forward_t.1} parent=0
    _
  %s8 = ssub.s32 1, %s6
  %s9 = scalar_select 0, %s8, %s6
  $region1: #{qnetwork_forward_t.1} parent=0
    #allocation2 [shape = 'u8[2048]{0}', space=vmem, size = 0x800, scoped, tag = 'output window, operand 0, single buffered']
    #allocation3 [shape = 's32[1]{0}', space=sflag, size = 0x4, scoped, tag = 'scoped memory for qnetwork_forward_t.1']
    %10 = vsyncpa [#allocation3], 0
    // Predicated region
    $region2: #{qnetwork_forward_t.1} parent=1 // pred_check
      _
    $region3: #{qnetwork_forward_t.1} parent=1 // pred_check_branch
      %12 = sbr.rel (0) target = $region5
    $region4: #{qnetwork_forward_t.1} parent=1 // pred_region
      _
    $region5: #{qnetwork_forward_t.1} parent=1 // pred_fallthru
      _
    // Predicated region
    $region6: #{qnetwork_forward_t.1} parent=1 // pred_check
      _
    $region7: #{qnetwork_forward_t.1} parent=1 // pred_check_branch
      %14 = sbr.rel (0) target = $region9
    $region8: #{qnetwork_forward_t.1} parent=1 // pred_region
      _
    $region9: #{qnetwork_forward_t.1} parent=1 // pred_fallthru
      _
    // Predicated region
    $region10: #{qnetwork_forward_t.1} parent=1 // pred_check
      _
    $region11: #{qnetwork_forward_t.1} parent=1 // pred_check_branch
      %16 = sbr.rel (0) target = $region13
    $region12: #{qnetwork_forward_t.1} parent=1 // pred_region
      _
    $region13: #{qnetwork_forward_t.1} parent=1 // pred_fallthru
      _
    // Predicated region
    $region14: #{qnetwork_forward_t.1} parent=1 // pred_check
      _
    $region15: #{qnetwork_forward_t.1} parent=1 // pred_check_branch
      %18 = sbr.rel (0) target = $region17
    $region16: #{qnetwork_forward_t.1} parent=1 // pred_region
      _
    $region17: #{qnetwork_forward_t.1} parent=1 // pred_fallthru
      _
    // Predicated region
    $region18: #{qnetwork_forward_t.1} parent=1 // pred_check
      _
    $region19: #{qnetwork_forward_t.1} parent=1 // pred_check_branch
      %20 = sbr.rel (0) target = $region21
    $region20: #{qnetwork_forward_t.1} parent=1 // pred_region
      _
    $region21: #{qnetwork_forward_t.1} parent=1 // pred_fallthru
      _
    %v21 = vld [vmem:[%s0] sm:$0xff]
    %v22 = vld [vmem:[%s4] sm:$0xff]
    %v23 = vld [vmem:[%s4 + $0x8] sm:$0xff]
    %v24 = vld [vmem:[%s4 + $0x10] sm:$0xff]
    %v25 = vld [vmem:[%s4 + $0x18] sm:$0xff]
    %v26 = vld [vmem:[%s4 + $0x20] sm:$0xff]
    %v27 = vld [vmem:[%s4 + $0x28] sm:$0xff]
    %v28 = vld [vmem:[%s4 + $0x30] sm:$0xff]
    %v29 = vld [vmem:[%s4 + $0x38] sm:$0xff]
    %v30 = vld [vmem:[%s4 + $0x40] sm:$0xff]
    %v31 = vld [vmem:[%s4 + $0x48] sm:$0xff]
    %v32 = vld [vmem:[%s4 + $0x50] sm:$0xff]
    %v33 = vld [vmem:[%s4 + $0x58] sm:$0xff]
    %v34 = vld [vmem:[%s4 + $0x60] sm:$0xff]
    %v35 = vld [vmem:[%s4 + $0x68] sm:$0xff]
    %v36 = vld [vmem:[%s4 + $0x70] sm:$0xff]
    %v37 = vld [vmem:[%s4 + $0x78] sm:$0xff]
    %v38 = vld [vmem:[%s4 + $0x80] sm:$0xf]
    %v39 = vld [vmem:[%s1] sm:$0xff]
    %v40 = vld [vmem:[%s1 + $0x8] sm:$0xff]
    %v41 = vld [vmem:[%s1 + $0x10] sm:$0xff]
    %v42 = vld [vmem:[%s1 + $0x18] sm:$0xff]
    %v43 = vld [vmem:[%s1 + $0x20] sm:$0xff]
    %v44 = vld [vmem:[%s1 + $0x28] sm:$0xff]
    %v45 = vld [vmem:[%s1 + $0x30] sm:$0xff]
    %v46 = vld [vmem:[%s1 + $0x38] sm:$0xff]
    %48 = vset.pattern.permute.xlu0 0
    %49 = vperm.xlu0 %48, %v22
    %v50 = vpop.permute.xlu0 %49
    %53 = vset.pattern.permute.xlu0 0
    %54 = vperm.xlu0 %53, %v23
    %v55 = vpop.permute.xlu0 %54
    %58 = vset.pattern.permute.xlu0 0
    %59 = vperm.xlu0 %58, %v24
    %v60 = vpop.permute.xlu0 %59
    %63 = vset.pattern.permute.xlu0 0
    %64 = vperm.xlu0 %63, %v25
    %v65 = vpop.permute.xlu0 %64
    %68 = vset.pattern.permute.xlu0 0
    %69 = vperm.xlu0 %68, %v26
    %v70 = vpop.permute.xlu0 %69
    %73 = vset.pattern.permute.xlu0 0
    %74 = vperm.xlu0 %73, %v27
    %v75 = vpop.permute.xlu0 %74
    %78 = vset.pattern.permute.xlu0 0
    %79 = vperm.xlu0 %78, %v28
    %v80 = vpop.permute.xlu0 %79
    %83 = vset.pattern.permute.xlu0 0
    %84 = vperm.xlu0 %83, %v29
    %v85 = vpop.permute.xlu0 %84
    %vm87 = vcmask 64512
    %v89 = vsel %vm87, %v39, 0
    %v92 = vsel %vm87, %v40, 0
    %v95 = vsel %vm87, %v41, 0
    %v98 = vsel %vm87, %v42, 0
    %v101 = vsel %vm87, %v43, 0
    %v104 = vsel %vm87, %v44, 0
    %v107 = vsel %vm87, %v45, 0
    %v110 = vsel %vm87, %v46, 0
    %112 = vmatpush.msra.mxu0 0.0
    %113 = vmatpush.msra.mxu0 0.0
    %114 = vmatpush.msra.mxu0 0.0
    %115 = vmatpush.msra.mxu0 0.0
    %116 = vmatpush.msra.mxu0 0.0
    %117 = vmatpush.msra.mxu0 0.0
    %118 = vmatpush.msra.mxu0 0.0
    %119 = vmatpush.msra.mxu0 0.0
    %120 = vmatpush.msra.mxu0 0.0
    %121 = vmatpush.msra.mxu0 0.0
    %122 = vmatpush.msra.mxu0 0.0
    %123 = vmatpush.msra.mxu0 0.0
    %124 = vmatpush.msra.mxu0 0.0
    %125 = vmatpush.msra.mxu0 0.0
    %126 = vmatpush.msra.mxu0 0.0
    %127 = vmatpush.msra.mxu0 %v21
    %128 = vmatmul.f32.gmra.mxu0 %v89
    %v129 = vpop.f32.mrf.mxu0
    %v130 = vadd.f32 %v50, %v129
    %131 = vmatmul.f32.gmra.mxu0 %v92
    %v132 = vpop.f32.mrf.mxu0
    %v133 = vadd.f32 %v55, %v132
    %134 = vmatmul.f32.gmra.mxu0 %v95
    %v135 = vpop.f32.mrf.mxu0
    %v136 = vadd.f32 %v60, %v135
    %137 = vmatmul.f32.gmra.mxu0 %v98
    %v138 = vpop.f32.mrf.mxu0
    %v139 = vadd.f32 %v65, %v138
    %140 = vmatmul.f32.gmra.mxu0 %v101
    %v141 = vpop.f32.mrf.mxu0
    %v142 = vadd.f32 %v70, %v141
    %143 = vmatmul.f32.gmra.mxu0 %v104
    %v144 = vpop.f32.mrf.mxu0
    %v145 = vadd.f32 %v75, %v144
    %146 = vmatmul.f32.gmra.mxu0 %v107
    %v147 = vpop.f32.mrf.mxu0
    %v148 = vadd.f32 %v80, %v147
    %149 = vmatmul.f32.gmra.mxu0 %v110
    %v150 = vpop.f32.mrf.mxu0
    %v151 = vadd.f32 %v85, %v150
    %152 = vdwg.mxu0
    %v153 = vmax.f32 %v130, 0.0
    %v154 = vmax.f32 %v133, 0.0
    %v155 = vmax.f32 %v136, 0.0
    %v156 = vmax.f32 %v139, 0.0
    %v157 = vmax.f32 %v142, 0.0
    %v158 = vmax.f32 %v145, 0.0
    %v159 = vmax.f32 %v148, 0.0
    %v160 = vmax.f32 %v151, 0.0
    %v161 = vld [vmem:[%s2] sm:$0xff]
    %v162 = vld [vmem:[%s2 + $0x8] sm:$0xff]
    %v163 = vld [vmem:[%s2 + $0x10] sm:$0xff]
    %v164 = vld [vmem:[%s2 + $0x18] sm:$0xff]
    %v165 = vld [vmem:[%s2 + $0x20] sm:$0xff]
    %v166 = vld [vmem:[%s2 + $0x28] sm:$0xff]
    %v167 = vld [vmem:[%s2 + $0x30] sm:$0xff]
    %v168 = vld [vmem:[%s2 + $0x38] sm:$0xff]
    %170 = vset.pattern.permute.xlu0 0
    %171 = vperm.xlu0 %170, %v30
    %v172 = vpop.permute.xlu0 %171
    %175 = vset.pattern.permute.xlu0 0
    %176 = vperm.xlu0 %175, %v31
    %v177 = vpop.permute.xlu0 %176
    %180 = vset.pattern.permute.xlu0 0
    %181 = vperm.xlu0 %180, %v32
    %v182 = vpop.permute.xlu0 %181
    %185 = vset.pattern.permute.xlu0 0
    %186 = vperm.xlu0 %185, %v33
    %v187 = vpop.permute.xlu0 %186
    %190 = vset.pattern.permute.xlu0 0
    %191 = vperm.xlu0 %190, %v34
    %v192 = vpop.permute.xlu0 %191
    %195 = vset.pattern.permute.xlu0 0
    %196 = vperm.xlu0 %195, %v35
    %v197 = vpop.permute.xlu0 %196
    %200 = vset.pattern.permute.xlu0 0
    %201 = vperm.xlu0 %200, %v36
    %v202 = vpop.permute.xlu0 %201
    %205 = vset.pattern.permute.xlu0 0
    %206 = vperm.xlu0 %205, %v37
    %v207 = vpop.permute.xlu0 %206
    %vm209 = vcmask 523264
    %v211 = vsel %vm209, %v161, 0
    %v214 = vsel %vm209, %v162, 0
    %v217 = vsel %vm209, %v163, 0
    %v220 = vsel %vm209, %v164, 0
    %v223 = vsel %vm209, %v165, 0
    %v226 = vsel %vm209, %v166, 0
    %v229 = vsel %vm209, %v167, 0
    %v232 = vsel %vm209, %v168, 0
    %234 = vmatpush.msra.mxu0 0.0
    %235 = vmatpush.msra.mxu0 0.0
    %236 = vmatpush.msra.mxu0 0.0
    %237 = vmatpush.msra.mxu0 0.0
    %238 = vmatpush.msra.mxu0 0.0
    %239 = vmatpush.msra.mxu0 0.0
    %240 = vmatpush.msra.mxu0 0.0
    %241 = vmatpush.msra.mxu0 0.0
    %242 = vmatpush.msra.mxu0 %v160
    %243 = vmatpush.msra.mxu0 %v159
    %244 = vmatpush.msra.mxu0 %v158
    %245 = vmatpush.msra.mxu0 %v157
    %246 = vmatpush.msra.mxu0 %v156
    %247 = vmatpush.msra.mxu0 %v155
    %248 = vmatpush.msra.mxu0 %v154
    %249 = vmatpush.msra.mxu0 %v153
    %250 = vmatmul.f32.gmra.mxu0 %v211
    %v251 = vpop.f32.mrf.mxu0
    %v252 = vadd.f32 %v172, %v251
    %253 = vmatmul.f32.gmra.mxu0 %v214
    %v254 = vpop.f32.mrf.mxu0
    %v255 = vadd.f32 %v177, %v254
    %256 = vmatmul.f32.gmra.mxu0 %v217
    %v257 = vpop.f32.mrf.mxu0
    %v258 = vadd.f32 %v182, %v257
    %259 = vmatmul.f32.gmra.mxu0 %v220
    %v260 = vpop.f32.mrf.mxu0
    %v261 = vadd.f32 %v187, %v260
    %262 = vmatmul.f32.gmra.mxu0 %v223
    %v263 = vpop.f32.mrf.mxu0
    %v264 = vadd.f32 %v192, %v263
    %265 = vmatmul.f32.gmra.mxu0 %v226
    %v266 = vpop.f32.mrf.mxu0
    %v267 = vadd.f32 %v197, %v266
    %268 = vmatmul.f32.gmra.mxu0 %v229
    %v269 = vpop.f32.mrf.mxu0
    %v270 = vadd.f32 %v202, %v269
    %271 = vmatmul.f32.gmra.mxu0 %v232
    %v272 = vpop.f32.mrf.mxu0
    %v273 = vadd.f32 %v207, %v272
    %274 = vdwg.mxu0
    %v275 = vmax.f32 %v252, 0.0
    %v276 = vmax.f32 %v255, 0.0
    %v277 = vmax.f32 %v258, 0.0
    %v278 = vmax.f32 %v261, 0.0
    %v279 = vmax.f32 %v264, 0.0
    %v280 = vmax.f32 %v267, 0.0
    %v281 = vmax.f32 %v270, 0.0
    %v282 = vmax.f32 %v273, 0.0
    %v283 = vld [vmem:[%s3] sm:$0xf]
    %285 = vset.pattern.permute.xlu0 0
    %286 = vperm.xlu0 %285, %v38
    %v287 = vpop.permute.xlu0 %286
    %v290 = vsel %vm209, %v283, 0
    %292 = vmatpush.msra.mxu0 0.0
    %293 = vmatpush.msra.mxu0 0.0
    %294 = vmatpush.msra.mxu0 0.0
    %295 = vmatpush.msra.mxu0 0.0
    %296 = vmatpush.msra.mxu0 0.0
    %297 = vmatpush.msra.mxu0 0.0
    %298 = vmatpush.msra.mxu0 0.0
    %299 = vmatpush.msra.mxu0 0.0
    %300 = vmatpush.msra.mxu0 %v282
    %301 = vmatpush.msra.mxu0 %v281
    %302 = vmatpush.msra.mxu0 %v280
    %303 = vmatpush.msra.mxu0 %v279
    %304 = vmatpush.msra.mxu0 %v278
    %305 = vmatpush.msra.mxu0 %v277
    %306 = vmatpush.msra.mxu0 %v276
    %307 = vmatpush.msra.mxu0 %v275
    %308 = vmatmul.f32.gmra.mxu0 %v290
    %v309 = vpop.f32.mrf.mxu0
    %v310 = vadd.f32 %v287, %v309
    %311 = vdwg.mxu0
    %312 = vst [vmem:[#allocation2] sm:$0xf] %v310
    // Predicated region
    $region22: #{qnetwork_forward_t.1} parent=1 // pred_check
      _
    $region23: #{qnetwork_forward_t.1} parent=1 // pred_check_branch
      %314 = sbr.rel (0) target = $region25
    $region24: #{qnetwork_forward_t.1} parent=1 // pred_region
      %316 = vsyncadd [#allocation3], 0
      %s318 = sshll.u32 [#allocation2], 4
      %s319 = int_to_ptr.vmem [resolvable:$true] %s318
      %s320 = sshll.u32 %s5, 4
      %s321 = int_to_ptr.hbm [resolvable:$true] %s320
      %323 = dma.vmem_to_hbm [thread:$0]  %s319, 64, %s321, [#allocation3]
    $region25: #{qnetwork_forward_t.1} parent=1 // pred_fallthru
      _
    // Predicated region
    $region26: #{qnetwork_forward_t.1} parent=1 // pred_check
      _
    $region27: #{qnetwork_forward_t.1} parent=1 // pred_check_branch
      %325 = sbr.rel (0) target = $region29
    $region28: #{qnetwork_forward_t.1} parent=1 // pred_region
      %327 = dma.done [#allocation3], 64
    $region29: #{qnetwork_forward_t.1} parent=1 // pred_fallthru
      _
    %328 = vsyncpa [#allocation3], 1

</llo_original>
